<compile_context>
chip_gen: v7x
topology: tpu7x:2x2x1
jax: 0.10.0
libtpu: 0.0.40
codegen_flags: <defaults>
</compile_context>

<pallas_src>
import functools

import jax
import jax.numpy as jnp
from jax.experimental import pallas as pl
from jax.experimental.pallas import tpu as pltpu

MAX_TILE_B = 4096  # rows per grid step cap (multiple of 8); VMEM-safe on v7x


def _round_up(n, m):
    return ((n + m - 1) // m) * m


def _policy_kernel(x_ref,
                   wsh_ref, bsh_ref,
                   w1_ref, b1_ref,
                   w2_ref, b2_ref,
                   wo_ref, bo_ref,
                   out_ref, *, actor_width):
    cdt = wsh_ref.dtype  # matmul operand dtype (bf16)

    x = x_ref[...]  # [TILE_B, in], already in compute dtype

    # shared trunk: [TILE_B, in] @ [in, 64]  (bf16 operands, f32 accumulate)
    h = jnp.tanh(jnp.dot(x, wsh_ref[...],
                         preferred_element_type=jnp.float32) + bsh_ref[...])

    # fused head layer 1: actor cols 0..31, critic cols 32..63
    h = jnp.tanh(jnp.dot(h.astype(cdt), w1_ref[...],
                         preferred_element_type=jnp.float32) + b1_ref[...])

    # fused head layer 2: block-diagonal, keeps actor/critic channels separate
    h = jnp.tanh(jnp.dot(h.astype(cdt), w2_ref[...],
                         preferred_element_type=jnp.float32) + b2_ref[...])

    # fused output layer: narrow lane slab [TILE_B, out_w]
    z = jnp.dot(h.astype(cdt), wo_ref[...],
                preferred_element_type=jnp.float32) + bo_ref[...]

    # tanh on actor lanes only; critic lane (index == actor_width) stays
    # linear.  Mask is a single (1, out_w) iota row, broadcast by where.
    lane = jax.lax.broadcasted_iota(jnp.int32, (1, z.shape[-1]), 1)
    out_ref[...] = jnp.where(lane < actor_width, jnp.tanh(z), z).astype(out_ref.dtype)


def pack_params(params, output_size, out_w, compute_dtype=jnp.bfloat16):
    """Fuse actor/critic head weights offline into 4 lane-friendly matrices.

    Weights are cast to `compute_dtype` (bf16) for the MXU; biases stay f32
    since they are added to the f32 accumulator.
    """
    f32 = jnp.float32
    wdt = compute_dtype

    wsh = params["wsh"].astype(wdt)                                       # [in, 64]
    bsh = params["bsh"].astype(f32)                                       # [1, 64]

    w1 = jnp.concatenate([params["wa1"], params["wc1"]], axis=1).astype(wdt)   # [64, 64]
    b1 = jnp.concatenate([params["ba1"], params["bc1"]], axis=1).astype(f32)   # [1, 64]

    w2 = jnp.zeros((64, 64), f32)
    w2 = w2.at[:32, :32].set(params["wa2"]).at[32:, 32:].set(params["wc2"])
    w2 = w2.astype(wdt)                                                    # [64, 64]
    b2 = jnp.concatenate([params["ba2"], params["bc2"]], axis=1).astype(f32)   # [1, 64]

    wo = jnp.zeros((64, out_w), f32)
    wo = wo.at[:32, :output_size].set(params["wao"])
    wo = wo.at[32:, output_size:output_size + 1].set(params["wco"])
    wo = wo.astype(wdt)                                                    # [64, out_w]
    bo = jnp.zeros((1, out_w), f32)
    bo = bo.at[:, :output_size].set(params["bao"])
    bo = bo.at[:, output_size:output_size + 1].set(params["bco"])          # [1, out_w]

    return (wsh, bsh, w1, b1, w2, b2, wo, bo)


def actor_critic_forward(x, params, compute_dtype=jnp.bfloat16):
    """x: [B, input_size] float32. params: dict of (W [in,out], b [1,out])."""
    B, input_size = x.shape
    output_size = params["wao"].shape[1]

    # Narrow, sublane-aligned output width: actor logits + critic value + pad.
    out_w = _round_up(output_size + 1, 8)

    packed = pack_params(params, output_size, out_w, compute_dtype)

    # Batch tile: as large as possible (multiple of 8), bounded padding waste.
    if B <= MAX_TILE_B:
        tile_b = _round_up(B, 8)
    else:
        n_tiles = -(-B // MAX_TILE_B)                  # ceil(B / MAX_TILE_B)
        tile_b = _round_up(-(-B // n_tiles), 8)        # ~B/n_tiles, rounded up
    b_pad = _round_up(B, tile_b)

    x = x.astype(compute_dtype)
    if b_pad != B:
        x = jnp.pad(x, ((0, b_pad - B), (0, 0)))
    grid = (b_pad // tile_b,)

    def const_spec(arr):
        return pl.BlockSpec(arr.shape, lambda i: (0, 0))

    in_specs = [pl.BlockSpec((tile_b, input_size), lambda i: (i, 0))]  # x: batch-tiled
    in_specs += [const_spec(p) for p in packed]                        # weights/biases
    out_specs = pl.BlockSpec((tile_b, out_w), lambda i: (i, 0))

    param_bytes = sum(int(p.size) * p.dtype.itemsize for p in packed)
    cost = pl.CostEstimate(
        flops=2 * b_pad * (input_size * 64 + 64 * 64 + 64 * 64 + 64 * out_w),
        transcendentals=b_pad * (64 + 64 + 64 + out_w),
        bytes_accessed=(x.dtype.itemsize * b_pad * input_size
                        + 4 * b_pad * out_w + param_bytes),
    )

    out = pl.pallas_call(
        functools.partial(_policy_kernel, actor_width=output_size),
        out_shape=jax.ShapeDtypeStruct((b_pad, out_w), jnp.float32),
        grid_spec=pltpu.PrefetchScalarGridSpec(
            num_scalar_prefetch=0,
            grid=grid,
            in_specs=in_specs,
            out_specs=out_specs,
        ),
        compiler_params=pltpu.CompilerParams(
            dimension_semantics=("parallel",),
        ),
        cost_estimate=cost,
    )(x, *packed)

    actor = out[:B, :output_size]
    critic = out[:B, output_size:output_size + 1]
    return actor, critic


def init_params(key, input_size, output_size):
    """Deterministic init mimicking nn.Linear (uniform +-1/sqrt(fan_in)).
    Weights stored pre-transposed as [in, out]; biases as [1, out]."""
    layer_dims = {
        "sh": (input_size, 64),
        "a1": (64, 32),
        "a2": (32, 32),
        "ao": (32, output_size),
        "c1": (64, 32),
        "c2": (32, 32),
        "co": (32, 1),
        # critic_scaling (1 -> 1) exists in __init__ but is unused in forward.
    }
    params = {}
    keys = jax.random.split(key, 2 * len(layer_dims))
    for i, (name, (fan_in, fan_out)) in enumerate(layer_dims.items()):
        bound = 1.0 / jnp.sqrt(jnp.float32(fan_in))
        w = jax.random.uniform(keys[2 * i], (fan_in, fan_out),
                               minval=-bound, maxval=bound, dtype=jnp.float32)
        b = jax.random.uniform(keys[2 * i + 1], (1, fan_out),
                               minval=-bound, maxval=bound, dtype=jnp.float32)
        params["w" + name] = w
        params["b" + name] = b
    return params


def reference_forward(x, params):
    h = jnp.tanh(x @ params["wsh"] + params["bsh"])
    a = jnp.tanh(h @ params["wa1"] + params["ba1"])
    a = jnp.tanh(a @ params["wa2"] + params["ba2"])
    a = jnp.tanh(a @ params["wao"] + params["bao"])
    c = jnp.tanh(h @ params["wc1"] + params["bc1"])
    c = jnp.tanh(c @ params["wc2"] + params["bc2"])
    c = c @ params["wco"] + params["bco"]
    return a, c


if __name__ == "__main__":
    key = jax.random.PRNGKey(0)
    k_x, k_p = jax.random.split(key)

    batch = 8
    input_size = 16
    output_size = 4

    x = jax.random.normal(k_x, (batch, input_size), dtype=jnp.float32)
    params = init_params(k_p, input_size, output_size)

    actor, critic = actor_critic_forward(x, params)
    actor = jax.block_until_ready(actor)
    critic = jax.block_until_ready(critic)

    # Sanity check against a pure-JAX f32 reference of the same math.
    # Tolerance is loosened vs. the f32-only kernel because matmul operands
    # are now bf16 (f32 accumulation); outputs are tanh-bounded O(1).
    ref_actor, ref_critic = reference_forward(x, params)
    assert actor.shape == (batch, output_size)
    assert critic.shape == (batch, 1)
    assert jnp.allclose(actor, ref_actor, atol=2e-2, rtol=2e-2)
    assert jnp.allclose(critic, ref_critic, atol=2e-2, rtol=2e-2)

    print("KERNEL_OK")
</pallas_src>

<mosaic_0001>
module attributes {stable_mosaic.version = 11 : i64} {
  func.func @_policy_kernel(%arg0: i32, %arg1: memref<8x16xbf16, #tpu.memory_space<vmem>>, %arg2: memref<16x64xbf16, #tpu.memory_space<vmem>>, %arg3: memref<1x64xf32, #tpu.memory_space<vmem>>, %arg4: memref<64x64xbf16, #tpu.memory_space<vmem>>, %arg5: memref<1x64xf32, #tpu.memory_space<vmem>>, %arg6: memref<64x64xbf16, #tpu.memory_space<vmem>>, %arg7: memref<1x64xf32, #tpu.memory_space<vmem>>, %arg8: memref<64x8xbf16, #tpu.memory_space<vmem>>, %arg9: memref<1x8xf32, #tpu.memory_space<vmem>>, %arg10: memref<8x8xf32, #tpu.memory_space<vmem>>) attributes {dimension_semantics = [#tpu.dimension_semantics<parallel>], iteration_bounds = array<i64: 1>, scalar_prefetch = 0 : i64, scratch_operands = 0 : i64, tpu.core_type = #tpu.core_type<tc>, window_params = [{transform_indices = @transform_0, window_bounds = array<i64: 8, 16>}, {pipeline_mode = #tpu.pipeline_mode<synchronous>, transform_indices = @transform_1, window_bounds = array<i64: 16, 64>}, {pipeline_mode = #tpu.pipeline_mode<synchronous>, transform_indices = @transform_2, window_bounds = array<i64: 1, 64>}, {pipeline_mode = #tpu.pipeline_mode<synchronous>, transform_indices = @transform_3, window_bounds = array<i64: 64, 64>}, {pipeline_mode = #tpu.pipeline_mode<synchronous>, transform_indices = @transform_4, window_bounds = array<i64: 1, 64>}, {pipeline_mode = #tpu.pipeline_mode<synchronous>, transform_indices = @transform_5, window_bounds = array<i64: 64, 64>}, {pipeline_mode = #tpu.pipeline_mode<synchronous>, transform_indices = @transform_6, window_bounds = array<i64: 1, 64>}, {pipeline_mode = #tpu.pipeline_mode<synchronous>, transform_indices = @transform_7, window_bounds = array<i64: 64, 8>}, {pipeline_mode = #tpu.pipeline_mode<synchronous>, transform_indices = @transform_8, window_bounds = array<i64: 1, 8>}, {transform_indices = @transform_9, window_bounds = array<i64: 8, 8>}]} {
    %c0 = arith.constant 0 : index
    %c0_0 = arith.constant 0 : index
    %0 = vector.load %arg1[%c0, %c0_0] : memref<8x16xbf16, #tpu.memory_space<vmem>>, vector<8x16xbf16>
    %c0_1 = arith.constant 0 : index
    %c0_2 = arith.constant 0 : index
    %1 = vector.load %arg2[%c0_1, %c0_2] : memref<16x64xbf16, #tpu.memory_space<vmem>>, vector<16x64xbf16>
    %cst = arith.constant dense<0.000000e+00> : vector<8x64xf32>
    %2 = tpu.matmul %0, %1, %cst {dimension_numbers = #tpu.dot_dimension_numbers<[1], [0], [0], [1], [0, 0, 1, 1], [], []>} : vector<8x16xbf16>, vector<16x64xbf16>, vector<8x64xf32> -> vector<8x64xf32>
    %c0_3 = arith.constant 0 : index
    %c0_4 = arith.constant 0 : index
    %3 = vector.load %arg3[%c0_3, %c0_4] : memref<1x64xf32, #tpu.memory_space<vmem>>, vector<1x64xf32>
    %4 = vector.broadcast %3 : vector<1x64xf32> to vector<8x64xf32>
    %5 = arith.addf %2, %4 : vector<8x64xf32>
    %6 = math.tanh %5 : vector<8x64xf32>
    %7 = arith.truncf %6 : vector<8x64xf32> to vector<8x64xbf16>
    %c0_5 = arith.constant 0 : index
    %c0_6 = arith.constant 0 : index
    %8 = vector.load %arg4[%c0_5, %c0_6] : memref<64x64xbf16, #tpu.memory_space<vmem>>, vector<64x64xbf16>
    %cst_7 = arith.constant dense<0.000000e+00> : vector<8x64xf32>
    %9 = tpu.matmul %7, %8, %cst_7 {dimension_numbers = #tpu.dot_dimension_numbers<[1], [0], [0], [1], [0, 0, 1, 1], [], []>} : vector<8x64xbf16>, vector<64x64xbf16>, vector<8x64xf32> -> vector<8x64xf32>
    %c0_8 = arith.constant 0 : index
    %c0_9 = arith.constant 0 : index
    %10 = vector.load %arg5[%c0_8, %c0_9] : memref<1x64xf32, #tpu.memory_space<vmem>>, vector<1x64xf32>
    %11 = vector.broadcast %10 : vector<1x64xf32> to vector<8x64xf32>
    %12 = arith.addf %9, %11 : vector<8x64xf32>
    %13 = math.tanh %12 : vector<8x64xf32>
    %14 = arith.truncf %13 : vector<8x64xf32> to vector<8x64xbf16>
    %c0_10 = arith.constant 0 : index
    %c0_11 = arith.constant 0 : index
    %15 = vector.load %arg6[%c0_10, %c0_11] : memref<64x64xbf16, #tpu.memory_space<vmem>>, vector<64x64xbf16>
    %cst_12 = arith.constant dense<0.000000e+00> : vector<8x64xf32>
    %16 = tpu.matmul %14, %15, %cst_12 {dimension_numbers = #tpu.dot_dimension_numbers<[1], [0], [0], [1], [0, 0, 1, 1], [], []>} : vector<8x64xbf16>, vector<64x64xbf16>, vector<8x64xf32> -> vector<8x64xf32>
    %c0_13 = arith.constant 0 : index
    %c0_14 = arith.constant 0 : index
    %17 = vector.load %arg7[%c0_13, %c0_14] : memref<1x64xf32, #tpu.memory_space<vmem>>, vector<1x64xf32>
    %18 = vector.broadcast %17 : vector<1x64xf32> to vector<8x64xf32>
    %19 = arith.addf %16, %18 : vector<8x64xf32>
    %20 = math.tanh %19 : vector<8x64xf32>
    %21 = arith.truncf %20 : vector<8x64xf32> to vector<8x64xbf16>
    %c0_15 = arith.constant 0 : index
    %c0_16 = arith.constant 0 : index
    %22 = vector.load %arg8[%c0_15, %c0_16] : memref<64x8xbf16, #tpu.memory_space<vmem>>, vector<64x8xbf16>
    %cst_17 = arith.constant dense<0.000000e+00> : vector<8x8xf32>
    %23 = tpu.matmul %21, %22, %cst_17 {dimension_numbers = #tpu.dot_dimension_numbers<[1], [0], [0], [1], [0, 0, 1, 1], [], []>} : vector<8x64xbf16>, vector<64x8xbf16>, vector<8x8xf32> -> vector<8x8xf32>
    %c0_18 = arith.constant 0 : index
    %c0_19 = arith.constant 0 : index
    %24 = vector.load %arg9[%c0_18, %c0_19] : memref<1x8xf32, #tpu.memory_space<vmem>>, vector<1x8xf32>
    %25 = vector.broadcast %24 : vector<1x8xf32> to vector<8x8xf32>
    %26 = arith.addf %23, %25 : vector<8x8xf32>
    %27 = tpu.iota {dimensions = array<i32: 1>} : vector<1x8xi32>
    %c4_i32 = arith.constant 4 : i32
    %28 = vector.broadcast %c4_i32 : i32 to vector<1x8xi32>
    %29 = arith.cmpi slt, %27, %28 : vector<1x8xi32>
    %30 = math.tanh %26 : vector<8x8xf32>
    %31 = vector.shape_cast %29 : vector<1x8xi1> to vector<1x8xi1>
    %32 = vector.broadcast %31 : vector<1x8xi1> to vector<8x8xi1>
    %33 = arith.select %32, %30, %26 : vector<8x8xi1>, vector<8x8xf32>
    %c0_20 = arith.constant 0 : index
    %c0_21 = arith.constant 0 : index
    %34 = vector.load %arg10[%c0_20, %c0_21] : memref<8x8xf32, #tpu.memory_space<vmem>>, vector<8x8xf32>
    tpu.vector_store %arg10[%c0_20, %c0_21], %33 {strides = array<i32>} : memref<8x8xf32, #tpu.memory_space<vmem>>, vector<8x8xf32>,
    return
  }
  func.func @transform_0(%arg0: i32) -> (i32, i32) {
    %c0_i32 = arith.constant 0 : i32
    %c0_i32_0 = arith.constant 0 : i32
    return %arg0, %c0_i32 : i32, i32
  }
  func.func @transform_1(%arg0: i32) -> (i32, i32) {
    %c0_i32 = arith.constant 0 : i32
    %c0_i32_0 = arith.constant 0 : i32
    %c0_i32_1 = arith.constant 0 : i32
    return %c0_i32, %c0_i32_0 : i32, i32
  }
  func.func @transform_2(%arg0: i32) -> (i32, i32) {
    %c0_i32 = arith.constant 0 : i32
    %c0_i32_0 = arith.constant 0 : i32
    %c0_i32_1 = arith.constant 0 : i32
    return %c0_i32, %c0_i32_0 : i32, i32
  }
  func.func @transform_3(%arg0: i32) -> (i32, i32) {
    %c0_i32 = arith.constant 0 : i32
    %c0_i32_0 = arith.constant 0 : i32
    %c0_i32_1 = arith.constant 0 : i32
    return %c0_i32, %c0_i32_0 : i32, i32
  }
  func.func @transform_4(%arg0: i32) -> (i32, i32) {
    %c0_i32 = arith.constant 0 : i32
    %c0_i32_0 = arith.constant 0 : i32
    %c0_i32_1 = arith.constant 0 : i32
    return %c0_i32, %c0_i32_0 : i32, i32
  }
  func.func @transform_5(%arg0: i32) -> (i32, i32) {
    %c0_i32 = arith.constant 0 : i32
    %c0_i32_0 = arith.constant 0 : i32
    %c0_i32_1 = arith.constant 0 : i32
    return %c0_i32, %c0_i32_0 : i32, i32
  }
  func.func @transform_6(%arg0: i32) -> (i32, i32) {
    %c0_i32 = arith.constant 0 : i32
    %c0_i32_0 = arith.constant 0 : i32
    %c0_i32_1 = arith.constant 0 : i32
    return %c0_i32, %c0_i32_0 : i32, i32
  }
  func.func @transform_7(%arg0: i32) -> (i32, i32) {
    %c0_i32 = arith.constant 0 : i32
    %c0_i32_0 = arith.constant 0 : i32
    %c0_i32_1 = arith.constant 0 : i32
    return %c0_i32, %c0_i32_0 : i32, i32
  }
  func.func @transform_8(%arg0: i32) -> (i32, i32) {
    %c0_i32 = arith.constant 0 : i32
    %c0_i32_0 = arith.constant 0 : i32
    %c0_i32_1 = arith.constant 0 : i32
    return %c0_i32, %c0_i32_0 : i32, i32
  }
  func.func @transform_9(%arg0: i32) -> (i32, i32) {
    %c0_i32 = arith.constant 0 : i32
    %c0_i32_0 = arith.constant 0 : i32
    return %arg0, %c0_i32 : i32, i32
  }
}

</mosaic_0001>

<llo_original>
// kernel: tpu_custom_call.1
$region0: #{tpu_custom_call.1}
  #allocation0 [shape = 'u32[]', space=smem, size = 0x4, offset = 0x4, fixed_abs, tag = 'smem constant byte address 0x4 - core index']
  #allocation1 [shape = 'u32[144,128]{1,0:T(1,128)}', space=vmem, size = 0x12000, scoped, tag = 'internal scratch']
  %s0 = inlined_call_operand.vmem [shape: bf16[8,16], index: 0, kind: input, shape index: {}]
  %s1 = inlined_call_operand.vmem [shape: bf16[16,64], index: 1, kind: input, shape index: {}]
  %s2 = inlined_call_operand.vmem [shape: f32[1,64], index: 2, kind: input, shape index: {}]
  %s3 = inlined_call_operand.vmem [shape: bf16[64,64], index: 3, kind: input, shape index: {}]
  %s4 = inlined_call_operand.vmem [shape: f32[1,64], index: 4, kind: input, shape index: {}]
  %s5 = inlined_call_operand.hbm [shape: bf16[64,64], index: 5, kind: input, shape index: {}]
  %s6 = inlined_call_operand.vmem [shape: f32[1,64], index: 6, kind: input, shape index: {}]
  %s7 = inlined_call_operand.vmem [shape: bf16[64,8], index: 7, kind: input, shape index: {}]
  %s8 = inlined_call_operand.vmem [shape: f32[1,8], index: 8, kind: input, shape index: {}]
  %s9 = inlined_call_operand.hbm [shape: f32[8,8], index: 9, kind: output, shape index: {}]
  %s10 = sld [smem:[#allocation0]]
  $region50: #{tpu_custom_call.1} parent=0
    _
  %s12 = ssub.s32 1, %s10
  %s13 = scalar_select 0, %s12, %s10
  $region1: #{tpu_custom_call.1} parent=0
    #allocation2 [shape = 'u8[16384]{0}', space=vmem, size = 0x4000, scoped, tag = 'input window, operand 5, single buffered']
    #allocation3 [shape = 's32[1]{0}', space=sflag, size = 0x4, scoped, tag = 'scoped memory for tpu_custom_call.1']
    #allocation4 [shape = 's32[1]{0}', space=sflag, size = 0x4, scoped, tag = 'scoped memory for tpu_custom_call.1']
    #allocation5 [shape = 'u8[4096]{0}', space=vmem, size = 0x1000, scoped, tag = 'output window, operand 0, single buffered']
    %14 = vsyncpa [#allocation3], 0
    %15 = vsyncpa [#allocation4], 0
    // Predicated region
    $region2: #{tpu_custom_call.1} parent=1 // pred_check
      _
    $region3: #{tpu_custom_call.1} parent=1 // pred_check_branch
      %17 = sbr.rel (0) target = $region5
    $region4: #{tpu_custom_call.1} parent=1 // pred_region
      _
    $region5: #{tpu_custom_call.1} parent=1 // pred_fallthru
      _
    // Predicated region
    $region6: #{tpu_custom_call.1} parent=1 // pred_check
      _
    $region7: #{tpu_custom_call.1} parent=1 // pred_check_branch
      %19 = sbr.rel (0) target = $region9
    $region8: #{tpu_custom_call.1} parent=1 // pred_region
      _
    $region9: #{tpu_custom_call.1} parent=1 // pred_fallthru
      _
    // Predicated region
    $region10: #{tpu_custom_call.1} parent=1 // pred_check
      _
    $region11: #{tpu_custom_call.1} parent=1 // pred_check_branch
      %21 = sbr.rel (0) target = $region13
    $region12: #{tpu_custom_call.1} parent=1 // pred_region
      _
    $region13: #{tpu_custom_call.1} parent=1 // pred_fallthru
      _
    // Predicated region
    $region14: #{tpu_custom_call.1} parent=1 // pred_check
      _
    $region15: #{tpu_custom_call.1} parent=1 // pred_check_branch
      %23 = sbr.rel (0) target = $region17
    $region16: #{tpu_custom_call.1} parent=1 // pred_region
      _
    $region17: #{tpu_custom_call.1} parent=1 // pred_fallthru
      _
    // Predicated region
    $region18: #{tpu_custom_call.1} parent=1 // pred_check
      _
    $region19: #{tpu_custom_call.1} parent=1 // pred_check_branch
      %25 = sbr.rel (0) target = $region21
    $region20: #{tpu_custom_call.1} parent=1 // pred_region
      _
    $region21: #{tpu_custom_call.1} parent=1 // pred_fallthru
      _
    // Predicated region
    $region22: #{tpu_custom_call.1} parent=1 // pred_check
      _
    $region23: #{tpu_custom_call.1} parent=1 // pred_check_branch
      %27 = sbr.rel (0) target = $region25
    $region24: #{tpu_custom_call.1} parent=1 // pred_region
      %s29 = ssub.s32 512, 512
      %30 = vsyncadd [#allocation3], %s29
      %s31 = sshll.u32 [#allocation2], 4
      %s32 = int_to_ptr.vmem [resolvable:$true] %s31
      %37 = dma.hbm_to_vmem [thread:$0]  %s5, 512, %s32, [#allocation3], 64, 64, 4
    $region25: #{tpu_custom_call.1} parent=1 // pred_fallthru
      _
    // Predicated region
    $region26: #{tpu_custom_call.1} parent=1 // pred_check
      _
    $region27: #{tpu_custom_call.1} parent=1 // pred_check_branch
      %39 = sbr.rel (0) target = $region29
    $region28: #{tpu_custom_call.1} parent=1 // pred_region
      _
    $region29: #{tpu_custom_call.1} parent=1 // pred_fallthru
      _
    // Predicated region
    $region30: #{tpu_custom_call.1} parent=1 // pred_check
      _
    $region31: #{tpu_custom_call.1} parent=1 // pred_check_branch
      %41 = sbr.rel (0) target = $region33
    $region32: #{tpu_custom_call.1} parent=1 // pred_region
      _
    $region33: #{tpu_custom_call.1} parent=1 // pred_fallthru
      _
    // Predicated region
    $region34: #{tpu_custom_call.1} parent=1 // pred_check
      _
    $region35: #{tpu_custom_call.1} parent=1 // pred_check_branch
      %43 = sbr.rel (0) target = $region37
    $region36: #{tpu_custom_call.1} parent=1 // pred_region
      _
    $region37: #{tpu_custom_call.1} parent=1 // pred_fallthru
      _
    // Predicated region
    $region38: #{tpu_custom_call.1} parent=1 // pred_check
      _
    $region39: #{tpu_custom_call.1} parent=1 // pred_check_branch
      %45 = sbr.rel (0) target = $region41
    $region40: #{tpu_custom_call.1} parent=1 // pred_region
      %46 = dma.done [#allocation3], 512
    $region41: #{tpu_custom_call.1} parent=1 // pred_fallthru
      _
    %v48 = vld [vmem:[%s0] sm:$0xf]
    %v49 = vld [vmem:[%s1] sm:$0xf]
    %v50 = vld [vmem:[%s1 + $0x4] sm:$0xf]
    %v51 = vld [vmem:[%s2] sm:$0x1]
    %v53 = vlaneseq
    %v54 = vshrl.u32 %v53, 7
    %v55 = vsub.s32 0, %v54
    %v56 = vrot.slane %v51, %v55
    %v60 = vunpack.c.l.b16 %v49
    %v61 = vunpack.c.l.b16 %v50
    %v62 = vpack.c.b16 %v61, %v60
    %vm64 = vcmask 130048
    %v66 = vsel %vm64, %v48, 0
    %68 = vmatprep.subr.bf16.mxu0 0
    %69 = vmatpush1.bf16.msra.mxu0 %v62
    %70 = vmatprep.subr.bf16.mxu0 0
    %71 = vmatpush1.bf16.msra.mxu0 0
    %72 = vmatprep.subr.bf16.mxu0 0
    %73 = vmatpush1.bf16.msra.mxu0 0
    %74 = vmatprep.subr.bf16.mxu0 0
    %75 = vmatpush1.bf16.msra.mxu0 0
    %76 = vmatprep.subr.bf16.mxu0 0
    %77 = vmatpush1.bf16.msra.mxu0 0
    %78 = vmatprep.subr.bf16.mxu0 0
    %79 = vmatpush1.bf16.msra.mxu0 0
    %80 = vmatprep.subr.bf16.mxu0 0
    %81 = vmatpush1.bf16.msra.mxu0 0
    %82 = vmatprep.subr.bf16.mxu0 0
    %83 = vmatpush1.bf16.msra.mxu0 0
    %84 = vmatprep.subr.bf16.mxu0 0
    %85 = vmatpush1.bf16.msra.mxu0 0
    %86 = vmatprep.subr.bf16.mxu0 0
    %87 = vmatpush1.bf16.msra.mxu0 0
    %88 = vmatprep.subr.bf16.mxu0 0
    %89 = vmatpush1.bf16.msra.mxu0 0
    %90 = vmatprep.subr.bf16.mxu0 0
    %91 = vmatpush1.bf16.msra.mxu0 0
    %92 = vmatprep.subr.bf16.mxu0 0
    %93 = vmatpush1.bf16.msra.mxu0 0
    %94 = vmatprep.subr.bf16.mxu0 0
    %95 = vmatpush1.bf16.msra.mxu0 0
    %96 = vmatprep.subr.bf16.mxu0 0
    %97 = vmatpush1.bf16.msra.mxu0 0
    %98 = vmatprep.subr.bf16.mxu0 0
    %99 = vmatpush1.bf16.msra.mxu0 0
    %100 = vmatprep.mubr.bf16.mxu0 0
    %101 = vmatmul.mubr.bf16.gmra.mrb[0].mxu0 %v66
    %v102 = vpop.f32.mrb[0].mxu0
    %v103 = vadd.f32 %v56, %v102
    %v104 = vpop.f32.mrb[0].mxu0
    %v105 = vpop.f32.mrb[0].mxu0
    %v106 = vpop.f32.mrb[0].mxu0
    %107 = vdwg.mxu0
    %v108 = vtanh.pop %v103
    %v109 = vpack.c.bf16 %v108, %v108
    %v110 = vld [vmem:[%s3] sm:$0xf]
    %v111 = vld [vmem:[%s3 + $0x4] sm:$0xf]
    %v112 = vld [vmem:[%s3 + $0x8] sm:$0xf]
    %v113 = vld [vmem:[%s3 + $0xc] sm:$0xf]
    %v114 = vld [vmem:[%s3 + $0x10] sm:$0xf]
    %v115 = vld [vmem:[%s3 + $0x14] sm:$0xf]
    %v116 = vld [vmem:[%s3 + $0x18] sm:$0xf]
    %v117 = vld [vmem:[%s3 + $0x1c] sm:$0xf]
    %v118 = vld [vmem:[%s4] sm:$0x1]
    %v120 = vlaneseq
    %v121 = vshrl.u32 %v120, 7
    %v122 = vsub.s32 0, %v121
    %v123 = vrot.slane %v118, %v122
    %v133 = vunpack.c.l.b16 %v110
    %v134 = vunpack.c.l.b16 %v111
    %v135 = vunpack.c.l.b16 %v112
    %v136 = vunpack.c.l.b16 %v113
    %v137 = vunpack.c.l.b16 %v114
    %v138 = vunpack.c.l.b16 %v115
    %v139 = vunpack.c.l.b16 %v116
    %v140 = vunpack.c.l.b16 %v117
    %v141 = vpack.c.b16 %v134, %v133
    %v142 = vpack.c.b16 %v136, %v135
    %v143 = vpack.c.b16 %v138, %v137
    %v144 = vpack.c.b16 %v140, %v139
    %vm149 = vcmask 523264
    %v151 = vsel %vm149, %v109, 0
    %153 = vmatprep.subr.bf16.mxu0 0
    %154 = vmatpush1.bf16.msra.mxu0 %v141
    %155 = vmatprep.subr.bf16.mxu0 0
    %156 = vmatpush1.bf16.msra.mxu0 %v142
    %157 = vmatprep.subr.bf16.mxu0 0
    %158 = vmatpush1.bf16.msra.mxu0 %v143
    %159 = vmatprep.subr.bf16.mxu0 0
    %160 = vmatpush1.bf16.msra.mxu0 %v144
    %161 = vmatprep.subr.bf16.mxu0 0
    %162 = vmatpush1.bf16.msra.mxu0 0
    %163 = vmatprep.subr.bf16.mxu0 0
    %164 = vmatpush1.bf16.msra.mxu0 0
    %165 = vmatprep.subr.bf16.mxu0 0
    %166 = vmatpush1.bf16.msra.mxu0 0
    %167 = vmatprep.subr.bf16.mxu0 0
    %168 = vmatpush1.bf16.msra.mxu0 0
    %169 = vmatprep.subr.bf16.mxu0 0
    %170 = vmatpush1.bf16.msra.mxu0 0
    %171 = vmatprep.subr.bf16.mxu0 0
    %172 = vmatpush1.bf16.msra.mxu0 0
    %173 = vmatprep.subr.bf16.mxu0 0
    %174 = vmatpush1.bf16.msra.mxu0 0
    %175 = vmatprep.subr.bf16.mxu0 0
    %176 = vmatpush1.bf16.msra.mxu0 0
    %177 = vmatprep.subr.bf16.mxu0 0
    %178 = vmatpush1.bf16.msra.mxu0 0
    %179 = vmatprep.subr.bf16.mxu0 0
    %180 = vmatpush1.bf16.msra.mxu0 0
    %181 = vmatprep.subr.bf16.mxu0 0
    %182 = vmatpush1.bf16.msra.mxu0 0
    %183 = vmatprep.subr.bf16.mxu0 0
    %184 = vmatpush1.bf16.msra.mxu0 0
    %185 = vmatprep.mubr.bf16.mxu0 0
    %186 = vmatmul.mubr.bf16.gmra.mrb[0].mxu0 %v151
    %v187 = vpop.f32.mrb[0].mxu0
    %v188 = vadd.f32 %v123, %v187
    %v189 = vpop.f32.mrb[0].mxu0
    %v190 = vpop.f32.mrb[0].mxu0
    %v191 = vpop.f32.mrb[0].mxu0
    %192 = vdwg.mxu0
    %v193 = vtanh.pop %v188
    %v194 = vpack.c.bf16 %v193, %v193
    %v195 = vld [vmem:[#allocation2] sm:$0xf]
    %v196 = vld [vmem:[#allocation2 + $0x4] sm:$0xf]
    %v197 = vld [vmem:[#allocation2 + $0x8] sm:$0xf]
    %v198 = vld [vmem:[#allocation2 + $0xc] sm:$0xf]
    %v199 = vld [vmem:[#allocation2 + $0x10] sm:$0xf]
    %v200 = vld [vmem:[#allocation2 + $0x14] sm:$0xf]
    %v201 = vld [vmem:[#allocation2 + $0x18] sm:$0xf]
    %v202 = vld [vmem:[#allocation2 + $0x1c] sm:$0xf]
    %v203 = vld [vmem:[%s6] sm:$0x1]
    %v205 = vlaneseq
    %v206 = vshrl.u32 %v205, 7
    %v207 = vsub.s32 0, %v206
    %v208 = vrot.slane %v203, %v207
    %v218 = vunpack.c.l.b16 %v195
    %v219 = vunpack.c.l.b16 %v196
    %v220 = vunpack.c.l.b16 %v197
    %v221 = vunpack.c.l.b16 %v198
    %v222 = vunpack.c.l.b16 %v199
    %v223 = vunpack.c.l.b16 %v200
    %v224 = vunpack.c.l.b16 %v201
    %v225 = vunpack.c.l.b16 %v202
    %v226 = vpack.c.b16 %v219, %v218
    %v227 = vpack.c.b16 %v221, %v220
    %v228 = vpack.c.b16 %v223, %v222
    %v229 = vpack.c.b16 %v225, %v224
    %v235 = vsel %vm149, %v194, 0
    %237 = vmatprep.subr.bf16.mxu0 0
    %238 = vmatpush1.bf16.msra.mxu0 %v226
    %239 = vmatprep.subr.bf16.mxu0 0
    %240 = vmatpush1.bf16.msra.mxu0 %v227
    %241 = vmatprep.subr.bf16.mxu0 0
    %242 = vmatpush1.bf16.msra.mxu0 %v228
    %243 = vmatprep.subr.bf16.mxu0 0
    %244 = vmatpush1.bf16.msra.mxu0 %v229
    %245 = vmatprep.subr.bf16.mxu0 0
    %246 = vmatpush1.bf16.msra.mxu0 0
    %247 = vmatprep.subr.bf16.mxu0 0
    %248 = vmatpush1.bf16.msra.mxu0 0
    %249 = vmatprep.subr.bf16.mxu0 0
    %250 = vmatpush1.bf16.msra.mxu0 0
    %251 = vmatprep.subr.bf16.mxu0 0
    %252 = vmatpush1.bf16.msra.mxu0 0
    %253 = vmatprep.subr.bf16.mxu0 0
    %254 = vmatpush1.bf16.msra.mxu0 0
    %255 = vmatprep.subr.bf16.mxu0 0
    %256 = vmatpush1.bf16.msra.mxu0 0
    %257 = vmatprep.subr.bf16.mxu0 0
    %258 = vmatpush1.bf16.msra.mxu0 0
    %259 = vmatprep.subr.bf16.mxu0 0
    %260 = vmatpush1.bf16.msra.mxu0 0
    %261 = vmatprep.subr.bf16.mxu0 0
    %262 = vmatpush1.bf16.msra.mxu0 0
    %263 = vmatprep.subr.bf16.mxu0 0
    %264 = vmatpush1.bf16.msra.mxu0 0
    %265 = vmatprep.subr.bf16.mxu0 0
    %266 = vmatpush1.bf16.msra.mxu0 0
    %267 = vmatprep.subr.bf16.mxu0 0
    %268 = vmatpush1.bf16.msra.mxu0 0
    %269 = vmatprep.mubr.bf16.mxu0 0
    %270 = vmatmul.mubr.bf16.gmra.mrb[0].mxu0 %v235
    %v271 = vpop.f32.mrb[0].mxu0
    %v272 = vadd.f32 %v208, %v271
    %v273 = vpop.f32.mrb[0].mxu0
    %v274 = vpop.f32.mrb[0].mxu0
    %v275 = vpop.f32.mrb[0].mxu0
    %276 = vdwg.mxu0
    %v277 = vtanh.pop %v272
    %v278 = vpack.c.bf16 %v277, %v277
    %v279 = vld [vmem:[%s7] sm:$0xf]
    %v280 = vld [vmem:[%s7 + $0x4] sm:$0xf]
    %v281 = vld [vmem:[%s7 + $0x8] sm:$0xf]
    %v282 = vld [vmem:[%s7 + $0xc] sm:$0xf]
    %v283 = vld [vmem:[%s7 + $0x10] sm:$0xf]
    %v284 = vld [vmem:[%s7 + $0x14] sm:$0xf]
    %v285 = vld [vmem:[%s7 + $0x18] sm:$0xf]
    %v286 = vld [vmem:[%s7 + $0x1c] sm:$0xf]
    %v287 = vld [vmem:[%s8] sm:$0x1]
    %v289 = vlaneseq
    %v290 = vshrl.u32 %v289, 7
    %v291 = vsub.s32 0, %v290
    %v292 = vrot.slane %v287, %v291
    %v302 = vunpack.c.l.b16 %v279
    %v303 = vunpack.c.l.b16 %v280
    %v304 = vunpack.c.l.b16 %v281
    %v305 = vunpack.c.l.b16 %v282
    %v306 = vunpack.c.l.b16 %v283
    %v307 = vunpack.c.l.b16 %v284
    %v308 = vunpack.c.l.b16 %v285
    %v309 = vunpack.c.l.b16 %v286
    %v310 = vpack.c.b16 %v303, %v302
    %v311 = vpack.c.b16 %v305, %v304
    %v312 = vpack.c.b16 %v307, %v306
    %v313 = vpack.c.b16 %v309, %v308
    %v319 = vsel %vm149, %v278, 0
    %321 = vmatprep.subr.bf16.mxu0 0
    %322 = vmatpush1.bf16.msra.mxu0 %v310
    %323 = vmatprep.subr.bf16.mxu0 0
    %324 = vmatpush1.bf16.msra.mxu0 %v311
    %325 = vmatprep.subr.bf16.mxu0 0
    %326 = vmatpush1.bf16.msra.mxu0 %v312
    %327 = vmatprep.subr.bf16.mxu0 0
    %328 = vmatpush1.bf16.msra.mxu0 %v313
    %329 = vmatprep.subr.bf16.mxu0 0
    %330 = vmatpush1.bf16.msra.mxu0 0
    %331 = vmatprep.subr.bf16.mxu0 0
    %332 = vmatpush1.bf16.msra.mxu0 0
    %333 = vmatprep.subr.bf16.mxu0 0
    %334 = vmatpush1.bf16.msra.mxu0 0
    %335 = vmatprep.subr.bf16.mxu0 0
    %336 = vmatpush1.bf16.msra.mxu0 0
    %337 = vmatprep.subr.bf16.mxu0 0
    %338 = vmatpush1.bf16.msra.mxu0 0
    %339 = vmatprep.subr.bf16.mxu0 0
    %340 = vmatpush1.bf16.msra.mxu0 0
    %341 = vmatprep.subr.bf16.mxu0 0
    %342 = vmatpush1.bf16.msra.mxu0 0
    %343 = vmatprep.subr.bf16.mxu0 0
    %344 = vmatpush1.bf16.msra.mxu0 0
    %345 = vmatprep.subr.bf16.mxu0 0
    %346 = vmatpush1.bf16.msra.mxu0 0
    %347 = vmatprep.subr.bf16.mxu0 0
    %348 = vmatpush1.bf16.msra.mxu0 0
    %349 = vmatprep.subr.bf16.mxu0 0
    %350 = vmatpush1.bf16.msra.mxu0 0
    %351 = vmatprep.subr.bf16.mxu0 0
    %352 = vmatpush1.bf16.msra.mxu0 0
    %353 = vmatprep.mubr.bf16.mxu0 0
    %354 = vmatmul.mubr.bf16.gmra.mrb[0].mxu0 %v319
    %v355 = vpop.f32.mrb[0].mxu0
    %v356 = vadd.f32 %v292, %v355
    %v357 = vpop.f32.mrb[0].mxu0
    %v358 = vpop.f32.mrb[0].mxu0
    %v359 = vpop.f32.mrb[0].mxu0
    %360 = vdwg.mxu0
    %v361 = vlaneseq
    %v362 = vand.u32 %v361, 127
    %vm363 = vcmp.lt.s32.totalorder %v362, 4
    %v364 = vtanh.pop %v356
    %v365 = vsel %vm363, 1, 0
    %vm366 = vcmp.eq.s32.totalorder %v365, 1
    %v367 = vsel %vm366, %v364, %v356
    %vm368 = vcmask 64512
    %369 = vst.msk [vmem:[#allocation5] sm:$0xff] %vm368, %v367
    // Predicated region
    $region42: #{tpu_custom_call.1} parent=1 // pred_check
      _
    $region43: #{tpu_custom_call.1} parent=1 // pred_check_branch
      %371 = sbr.rel (0) target = $region45
    $region44: #{tpu_custom_call.1} parent=1 // pred_region
      %s373 = ssub.s32 128, 128
      %374 = vsyncadd [#allocation4], %s373
      %s376 = sshll.u32 [#allocation5], 4
      %s377 = int_to_ptr.vmem [resolvable:$true] %s376
      %379 = dma.vmem_to_hbm [thread:$0]  %s377, 128, %s9, [#allocation4]
    $region45: #{tpu_custom_call.1} parent=1 // pred_fallthru
      _
    // Predicated region
    $region46: #{tpu_custom_call.1} parent=1 // pred_check
      _
    $region47: #{tpu_custom_call.1} parent=1 // pred_check_branch
      %381 = sbr.rel (0) target = $region49
    $region48: #{tpu_custom_call.1} parent=1 // pred_region
      %382 = dma.done [#allocation4], 128
    $region49: #{tpu_custom_call.1} parent=1 // pred_fallthru
      _
    %383 = vsyncpa [#allocation3], 1
    %384 = vsyncpa [#allocation4], 1

</llo_original>
